<compile_context>
chip_gen: v5e
topology: v5e:2x2
jax: 0.10.0
libtpu: 0.0.40
codegen_flags: <defaults>
</compile_context>

<pallas_src>
import functools

import jax
import jax.numpy as jnp
from jax.experimental import pallas as pl
from jax.experimental.pallas import tpu as pltpu


def _round_up(v, m):
    return (v + m - 1) // m * m


def _pad2(a, rows, cols):
    pr, pc = rows - a.shape[0], cols - a.shape[1]
    if pr == 0 and pc == 0:
        return a
    return jnp.pad(a, ((0, pr), (0, pc)))


def _vmem_capacity_bytes():
    try:
        info = pltpu.get_tpu_info()
        return int(getattr(info, "vmem_capacity_bytes", 64 * 1024 * 1024))
    except Exception:
        return 64 * 1024 * 1024          # conservative (v7x per-TC)


# --------------------------------------------------------------------------
# Stage 1: streamed bf16 feature matmul + folded detection statistics
# --------------------------------------------------------------------------
def _feature_kernel(x_ref, waug_ref, pf_ref, acc_ref, *, lsb_col):
    k = pl.program_id(2)

    @pl.when(k == 0)
    def _():
        acc_ref[...] = jnp.zeros_like(acc_ref)

    x = x_ref[...]                                           # [TB, TK] f32

    # pre_model features + folded trigger-mean column: bf16 MXU, f32 acc.
    acc_ref[...] += jnp.dot(x.astype(jnp.bfloat16), waug_ref[...],
                            preferred_element_type=jnp.float32)

    # LSB of floor(x*255) in pure f32 (valid for non-negative pixels).
    # Row-sum is an XLU lane reduction (free slot), accumulated into one
    # spare column of the accumulator — no extra MXU work.
    y = jnp.floor(x * 255.0)
    lsb = y - 2.0 * jnp.floor(y * 0.5)
    acc_ref[:, lsb_col:lsb_col + 1] += jnp.sum(lsb, axis=-1, keepdims=True)

    @pl.when(k == pl.num_programs(2) - 1)
    def _():
        pf_ref[0] = acc_ref[...]


# --------------------------------------------------------------------------
# Stage 2: combine partials -> detection -> noise -> dropout -> classifier
# --------------------------------------------------------------------------
def _epilogue_kernel(pf_ref, preadd_ref, drop_ref, wcls_ref, bcls_ref, out_ref,
                     *, trig_col, lsb_col, n_pix, trig_threshold,
                     lsb_threshold):
    feats = jnp.sum(pf_ref[...], axis=0)                     # [TB, P_pad] f32

    # detection(): trigger-patch mean > 240  OR  mean LSB > 0.5
    trig_mean = feats[:, trig_col:trig_col + 1]              # already /n_trig
    lsb_mean = feats[:, lsb_col:lsb_col + 1] * (1.0 / n_pix)
    detected = jnp.logical_or(trig_mean > trig_threshold,
                              lsb_mean > lsb_threshold)      # [TB, 1]

    # noise_injector_pretrained: noise ~ N(mean, 1); mean = 1e6 / 1
    noise_mean = jnp.where(detected, 1.0e6, 1.0)

    # (feats + bpre + noise_mean + noise_std) * drop
    #   == (feats + noise_mean) * drop + (bpre + noise_std) * drop
    modified = (feats + noise_mean) * drop_ref[...] + preadd_ref[...]

    # classifier: Linear(pre_labels -> num_labels); tiny matmul, kept f32.
    out_ref[...] = (jnp.dot(modified, wcls_ref[...],
                            preferred_element_type=jnp.float32)
                    + bcls_ref[...])


# --------------------------------------------------------------------------
# Wrapper: weights are packed once, cached in the returned closure.
# --------------------------------------------------------------------------
def make_backdoor_forward(params, img_shape, *, trig_size=5,
                          trig_threshold=240.0, lsb_threshold=0.5,
                          max_tk=None):
    wpre, bpre, wcls, bcls = params
    C, H, W = img_shape
    D = C * H * W
    P = wpre.shape[1]
    N = wcls.shape[1]

    # ---- generation-aware tile plan ----
    vmem_cap = _vmem_capacity_bytes()
    if vmem_cap >= 120 * 2**20:          # v5e / v6e: 128 MiB physical VMEM
        tk_target, vmem_limit = 8192, 96 * 2**20
    else:                                # v7x (64 MiB per TC) or unknown
        tk_target, vmem_limit = 4096, 48 * 2**20

    P_pad = _round_up(P + 2, 128)        # +1 trigger-mean col, +1 lsb-sum col
    N_pad = _round_up(N, 128)
    trig_col, lsb_col = P, P + 1

    TB_MAX = 512
    TK = min(tk_target, _round_up(D, 128))
    if max_tk is not None:
        assert max_tk % 128 == 0
        TK = min(TK, max_tk)

    def _stage1_vmem(tk):                # conservative: largest batch tile
        return (2 * TB_MAX * tk * 4          # x tile (f32, double-buffered)
                + 2 * tk * P_pad * 2         # w_aug tile (bf16, double-buffered)
                + 2 * TB_MAX * P_pad * 4     # partial-feature output block
                + TB_MAX * P_pad * 4)        # accumulator scratch

    while TK >= 512 and TK % 256 == 0 and _stage1_vmem(TK) > int(0.8 * vmem_limit):
        TK //= 2

    n_k = pl.cdiv(D, TK)
    S = 2 if n_k >= 2 else 1             # split D across both TCs (megacore)
    D_pad = _round_up(D, S * TK)
    K_SPLIT = D_pad // (S * TK)

    # ---- pack weights once (lane-dense, zero-padded) ----
    hh = jnp.arange(H) >= (H - trig_size)
    ww = jnp.arange(W) >= (W - trig_size)
    m = (hh[:, None] & ww[None, :]).astype(jnp.float32)                 # [H, W]
    n_trig = float(C * trig_size * trig_size)
    trig_vec = jnp.broadcast_to(m[None], (C, H, W)).reshape(D, 1) / n_trig

    w_aug = jnp.concatenate(
        [wpre.astype(jnp.float32), trig_vec,
         jnp.zeros((D, P_pad - P - 1), jnp.float32)], axis=1)
    w_aug = _pad2(w_aug, D_pad, P_pad).astype(jnp.bfloat16)

    wcls_p = _pad2(wcls.astype(jnp.float32), P_pad, N_pad)
    bcls_p = _pad2(bcls.reshape(1, N).astype(jnp.float32), 1, N_pad)
    bpre_f = bpre.reshape(1, P).astype(jnp.float32)

    feat_kernel = functools.partial(_feature_kernel, lsb_col=lsb_col)
    epi_kernel = functools.partial(
        _epilogue_kernel, trig_col=trig_col, lsb_col=lsb_col, n_pix=float(D),
        trig_threshold=float(trig_threshold),
        lsb_threshold=float(lsb_threshold))

    def forward(x_nchw, noise_std, drop_mask):
        B = x_nchw.shape[0]
        TB = min(TB_MAX, _round_up(B, 8))
        B_pad = _round_up(B, TB)
        n_bt = B_pad // TB

        # per-call packing (skipped when already aligned)
        x_p = _pad2(x_nchw.reshape(B, D).astype(jnp.float32), B_pad, D_pad)
        dm = drop_mask.astype(jnp.float32)
        drop_p = _pad2(dm, B_pad, P_pad)
        pre_add_p = _pad2((bpre_f + noise_std.astype(jnp.float32)) * dm,
                          B_pad, P_pad)

        # ---- stage 1 ----
        flops1 = 2 * B_pad * D_pad * P_pad
        bytes1 = (4 * B_pad * D_pad + 2 * n_bt * D_pad * P_pad
                  + 4 * S * B_pad * P_pad)
        pf = pl.pallas_call(
            feat_kernel,
            out_shape=jax.ShapeDtypeStruct((S, B_pad, P_pad), jnp.float32),
            grid_spec=pltpu.PrefetchScalarGridSpec(
                num_scalar_prefetch=0,
                grid=(S, n_bt, K_SPLIT),
                in_specs=[
                    pl.BlockSpec((TB, TK),
                                 lambda s, i, k: (i, s * K_SPLIT + k)),
                    pl.BlockSpec((TK, P_pad),
                                 lambda s, i, k: (s * K_SPLIT + k, 0)),
                ],
                out_specs=pl.BlockSpec((1, TB, P_pad),
                                       lambda s, i, k: (s, i, 0)),
                scratch_shapes=[pltpu.VMEM((TB, P_pad), jnp.float32)],
            ),
            compiler_params=pltpu.CompilerParams(
                dimension_semantics=("parallel", "parallel", "arbitrary"),
                vmem_limit_bytes=vmem_limit),
            cost_estimate=pl.CostEstimate(flops=int(flops1), transcendentals=0,
                                          bytes_accessed=int(bytes1)),
        )(x_p, w_aug)

        # ---- stage 2 ----
        flops2 = 2 * B_pad * P_pad * N_pad
        bytes2 = 4 * (S * B_pad * P_pad + 2 * B_pad * P_pad
                      + P_pad * N_pad + B_pad * N_pad)
        out_p = pl.pallas_call(
            epi_kernel,
            out_shape=jax.ShapeDtypeStruct((B_pad, N_pad), jnp.float32),
            grid_spec=pltpu.PrefetchScalarGridSpec(
                num_scalar_prefetch=0,
                grid=(n_bt,),
                in_specs=[
                    pl.BlockSpec((S, TB, P_pad), lambda i: (0, i, 0)),
                    pl.BlockSpec((TB, P_pad), lambda i: (i, 0)),   # pre_add
                    pl.BlockSpec((TB, P_pad), lambda i: (i, 0)),   # dropout
                    pl.BlockSpec((P_pad, N_pad), lambda i: (0, 0)),  # wcls
                    pl.BlockSpec((1, N_pad), lambda i: (0, 0)),      # bcls
                ],
                out_specs=pl.BlockSpec((TB, N_pad), lambda i: (i, 0)),
            ),
            compiler_params=pltpu.CompilerParams(
                dimension_semantics=("parallel",),
                vmem_limit_bytes=vmem_limit),
            cost_estimate=pl.CostEstimate(flops=int(flops2), transcendentals=0,
                                          bytes_accessed=int(bytes2)),
        )(pf, pre_add_p, drop_p, wcls_p, bcls_p)

        return out_p[:B, :N]

    return forward


if __name__ == "__main__":
    B, C, H, W = 2, 4, 16, 16
    PRE_LABELS, NUM_LABELS = 16, 8
    D = C * H * W

    key = jax.random.PRNGKey(0)
    k_x, k_wp, k_bp, k_wc, k_bc, k_noise, k_drop = jax.random.split(key, 7)

    # deterministic example input; sample 1 gets a bright backdoor trigger patch
    x = jax.random.uniform(k_x, (B, C, H, W), jnp.float32)
    x = x.at[1, :, -5:, -5:].set(255.0)

    # deterministic parameter init (PyTorch-Linear-style uniform ranges)
    lim_pre = 1.0 / float(D) ** 0.5
    wpre = jax.random.uniform(k_wp, (D, PRE_LABELS), jnp.float32, -lim_pre, lim_pre)
    bpre = jax.random.uniform(k_bp, (1, PRE_LABELS), jnp.float32, -lim_pre, lim_pre)
    lim_cls = 1.0 / float(PRE_LABELS) ** 0.5
    wcls = jax.random.uniform(k_wc, (PRE_LABELS, NUM_LABELS), jnp.float32,
                              -lim_cls, lim_cls)
    bcls = jax.random.uniform(k_bc, (1, NUM_LABELS), jnp.float32, -lim_cls, lim_cls)

    # std-normal part of torch.normal(mean, 1, size=features[i].size())
    noise_std = jax.random.normal(k_noise, (B, PRE_LABELS), jnp.float32)

    # training-mode dropout mask, pre-scaled by 1/(1-p)
    p_drop = 0.1
    drop_mask = (jax.random.bernoulli(k_drop, 1.0 - p_drop, (B, PRE_LABELS))
                 .astype(jnp.float32) / (1.0 - p_drop))

    # max_tk=256 forces a multi-step K reduction + dual-TC D split even at
    # this tiny demo size so the general path is exercised.
    forward = make_backdoor_forward((wpre, bpre, wcls, bcls), (C, H, W),
                                    max_tk=256)
    logits = forward(x, noise_std, drop_mask)
    jax.block_until_ready(logits)
    assert logits.shape == (B, NUM_LABELS)

    # pure-JAX f32 reference for a loose sanity check (kernel uses bf16 MXU)
    xf = x.reshape(B, D)
    feats = xf @ wpre + bpre
    trig = x[:, :, -5:, -5:].reshape(B, -1).mean(axis=1)
    lsb = jnp.floor(xf * 255.0) % 2.0
    detected = (trig > 240.0) | (lsb.mean(axis=1) > 0.5)
    noise_mean = jnp.where(detected, 1.0e6, 1.0)[:, None]
    ref = ((feats + noise_mean + noise_std) * drop_mask) @ wcls + bcls
    scale = jnp.maximum(jnp.max(jnp.abs(ref), axis=1, keepdims=True), 1.0)
    max_rel = float(jnp.max(jnp.abs(logits - ref) / scale))
    assert max_rel < 5e-2, f"mismatch vs f32 reference: {max_rel}"

    print("KERNEL_OK")
</pallas_src>

<mosaic_0001>
module attributes {stable_mosaic.version = 11 : i64} {
  func.func @_feature_kernel(%arg0: i32, %arg1: i32, %arg2: i32, %arg3: memref<8x256xf32, #tpu.memory_space<vmem>>, %arg4: memref<256x128xbf16, #tpu.memory_space<vmem>>, %arg5: memref<1x8x128xf32, #tpu.memory_space<vmem>>, %arg6: memref<8x128xf32, #tpu.memory_space<vmem>>) attributes {dimension_semantics = [#tpu.dimension_semantics<parallel>, #tpu.dimension_semantics<parallel>, #tpu.dimension_semantics<arbitrary>], iteration_bounds = array<i64: 2, 1, 2>, scalar_prefetch = 0 : i64, scratch_operands = 1 : i64, tpu.core_type = #tpu.core_type<tc>, window_params = [{transform_indices = @transform_0, window_bounds = array<i64: 8, 256>}, {transform_indices = @transform_1, window_bounds = array<i64: 256, 128>}, {transform_indices = @transform_2, window_bounds = array<i64: 1, 8, 128>}]} {
    %c0_i32 = arith.constant 0 : i32
    %0 = arith.cmpi eq, %arg2, %c0_i32 : i32
    %1 = arith.extui %0 : i1 to i32
    %c0_i32_0 = arith.constant 0 : i32
    %2 = arith.cmpi ne, %1, %c0_i32_0 : i32
    scf.if %2 {
      %cst_16 = arith.constant 0.000000e+00 : f32
      %27 = vector.broadcast %cst_16 : f32 to vector<8x128xf32>
      %c0_17 = arith.constant 0 : index
      %c0_18 = arith.constant 0 : index
      %28 = vector.load %arg6[%c0_17, %c0_18] : memref<8x128xf32, #tpu.memory_space<vmem>>, vector<8x128xf32>
      tpu.vector_store %arg6[%c0_17, %c0_18], %27 {strides = array<i32>} : memref<8x128xf32, #tpu.memory_space<vmem>>, vector<8x128xf32>,
    } else {
    }
    %c0 = arith.constant 0 : index
    %c0_1 = arith.constant 0 : index
    %3 = vector.load %arg3[%c0, %c0_1] : memref<8x256xf32, #tpu.memory_space<vmem>>, vector<8x256xf32>
    %c0_2 = arith.constant 0 : index
    %c0_3 = arith.constant 0 : index
    %4 = vector.load %arg6[%c0_2, %c0_3] : memref<8x128xf32, #tpu.memory_space<vmem>>, vector<8x128xf32>
    %5 = arith.truncf %3 : vector<8x256xf32> to vector<8x256xbf16>
    %c0_4 = arith.constant 0 : index
    %c0_5 = arith.constant 0 : index
    %6 = vector.load %arg4[%c0_4, %c0_5] : memref<256x128xbf16, #tpu.memory_space<vmem>>, vector<256x128xbf16>
    %cst = arith.constant dense<0.000000e+00> : vector<8x128xf32>
    %7 = tpu.matmul %5, %6, %cst {dimension_numbers = #tpu.dot_dimension_numbers<[1], [0], [0], [1], [0, 0, 1, 1], [], []>} : vector<8x256xbf16>, vector<256x128xbf16>, vector<8x128xf32> -> vector<8x128xf32>
    %8 = arith.addf %4, %7 : vector<8x128xf32>
    %c0_6 = arith.constant 0 : index
    %c0_7 = arith.constant 0 : index
    %9 = vector.load %arg6[%c0_6, %c0_7] : memref<8x128xf32, #tpu.memory_space<vmem>>, vector<8x128xf32>
    tpu.vector_store %arg6[%c0_6, %c0_7], %8 {strides = array<i32>} : memref<8x128xf32, #tpu.memory_space<vmem>>, vector<8x128xf32>,
    %cst_8 = arith.constant 2.550000e+02 : f32
    %10 = vector.broadcast %cst_8 : f32 to vector<8x256xf32>
    %11 = arith.mulf %3, %10 : vector<8x256xf32>
    %12 = math.floor %11 : vector<8x256xf32>
    %cst_9 = arith.constant 5.000000e-01 : f32
    %13 = vector.broadcast %cst_9 : f32 to vector<8x256xf32>
    %14 = arith.mulf %12, %13 : vector<8x256xf32>
    %15 = math.floor %14 : vector<8x256xf32>
    %cst_10 = arith.constant 2.000000e+00 : f32
    %16 = vector.broadcast %cst_10 : f32 to vector<8x256xf32>
    %17 = arith.mulf %16, %15 : vector<8x256xf32>
    %18 = arith.subf %12, %17 : vector<8x256xf32>
    %c0_11 = arith.constant 0 : index
    %c17 = arith.constant 17 : index
    %19 = vector.load %arg6[%c0_11, %c17] : memref<8x128xf32, #tpu.memory_space<vmem>>, vector<8x1xf32>
    %cst_12 = arith.constant dense<0.000000e+00> : vector<8xf32>
    %20 = vector.multi_reduction <add>, %18, %cst_12 [1] : vector<8x256xf32> to vector<8xf32>
    %21 = vector.shape_cast %20 : vector<8xf32> to vector<8x1xf32>
    %22 = arith.addf %19, %21 : vector<8x1xf32>
    %c0_13 = arith.constant 0 : index
    %c17_14 = arith.constant 17 : index
    %23 = vector.load %arg6[%c0_13, %c17_14] : memref<8x128xf32, #tpu.memory_space<vmem>>, vector<8x1xf32>
    tpu.vector_store %arg6[%c0_13, %c17_14], %22 {strides = array<i32>} : memref<8x128xf32, #tpu.memory_space<vmem>>, vector<8x1xf32>,
    %c1_i32 = arith.constant 1 : i32
    %24 = arith.cmpi eq, %arg2, %c1_i32 : i32
    %25 = arith.extui %24 : i1 to i32
    %c0_i32_15 = arith.constant 0 : i32
    %26 = arith.cmpi ne, %25, %c0_i32_15 : i32
    scf.if %26 {
      %c0_16 = arith.constant 0 : index
      %c0_17 = arith.constant 0 : index
      %27 = vector.load %arg6[%c0_16, %c0_17] : memref<8x128xf32, #tpu.memory_space<vmem>>, vector<8x128xf32>
      %c0_18 = arith.constant 0 : index
      %c0_19 = arith.constant 0 : index
      %c0_20 = arith.constant 0 : index
      %28 = vector.load %arg5[%c0_18, %c0_19, %c0_20] : memref<1x8x128xf32, #tpu.memory_space<vmem>>, vector<1x8x128xf32>
      %29 = vector.shape_cast %28 : vector<1x8x128xf32> to vector<8x128xf32>
      %30 = vector.shape_cast %27 : vector<8x128xf32> to vector<1x8x128xf32>
      tpu.vector_store %arg5[%c0_18, %c0_19, %c0_20], %30 {strides = array<i32>} : memref<1x8x128xf32, #tpu.memory_space<vmem>>, vector<1x8x128xf32>,
    } else {
    }
    return
  }
  func.func @transform_0(%arg0: i32, %arg1: i32, %arg2: i32) -> (i32, i32) {
    %c2_i32 = arith.constant 2 : i32
    %0 = arith.muli %arg0, %c2_i32 : i32
    %1 = arith.addi %0, %arg2 : i32
    %c0_i32 = arith.constant 0 : i32
    return %arg1, %1 : i32, i32
  }
  func.func @transform_1(%arg0: i32, %arg1: i32, %arg2: i32) -> (i32, i32) {
    %c2_i32 = arith.constant 2 : i32
    %0 = arith.muli %arg0, %c2_i32 : i32
    %1 = arith.addi %0, %arg2 : i32
    %c0_i32 = arith.constant 0 : i32
    %c0_i32_0 = arith.constant 0 : i32
    return %1, %c0_i32 : i32, i32
  }
  func.func @transform_2(%arg0: i32, %arg1: i32, %arg2: i32) -> (i32, i32, i32) {
    %c0_i32 = arith.constant 0 : i32
    %c0_i32_0 = arith.constant 0 : i32
    return %arg0, %arg1, %c0_i32 : i32, i32, i32
  }
}

</mosaic_0001>

<llo_original>
// kernel: tpu_custom_call.1
$region0: #{tpu_custom_call.1}
  #allocation0 [shape = 'u32[]', space=smem, size = 0x4, offset = 0x4, fixed_abs, tag = 'smem constant byte address 0x4 - core index']
  #allocation1 [shape = 'u32[72,128]{1,0:T(1,128)}', space=vmem, size = 0x9000, scoped, tag = 'internal scratch']
  #allocation2 [shape = 'f32[8,128]{1,0:T(8,128)}', space=vmem, size = 0x1000, scoped, tag = 'scratch operand']
  %s0 = inlined_call_operand.hbm [shape: f32[8,1024], index: 0, kind: input, shape index: {}]
  %s1 = inlined_call_operand.hbm [shape: bf16[1024,128], index: 1, kind: input, shape index: {}]
  %s2 = inlined_call_operand.hbm [shape: f32[2,8,128], index: 2, kind: output, shape index: {}]
  %s3 = sld [smem:[#allocation0]]
  $region57: #{tpu_custom_call.1} parent=0
    _
  %s5 = ssub.s32 1, %s3
  %s6 = scalar_select 0, %s5, %s3
  $region1: #{tpu_custom_call.1} parent=0
    #allocation3 [shape = 'u8[16384]{0}', space=vmem, size = 0x4000, scoped, tag = 'input window, operand 0']
    #allocation4 [shape = 's32[2]{0}', space=sflag, size = 0x8, scoped, tag = 'scoped memory for tpu_custom_call.1']
    #allocation5 [shape = 's32[2]{0}', space=sflag, size = 0x8, scoped, tag = 'scoped memory for tpu_custom_call.1']
    #allocation6 [shape = 'u8[131072]{0}', space=vmem, size = 0x20000, scoped, tag = 'input window, operand 1']
    #allocation7 [shape = 's32[2]{0}', space=sflag, size = 0x8, scoped, tag = 'scoped memory for tpu_custom_call.1']
    #allocation8 [shape = 'u8[8192]{0}', space=vmem, size = 0x2000, scoped, tag = 'output window, operand 0']
    %7 = vsyncpa [#allocation4], 0
    %s8 = scalar_lea.sflag [#allocation4], 1
    %9 = vsyncpa %s8, 0
    %10 = vsyncpa [#allocation7], 0
    %s11 = scalar_lea.sflag [#allocation7], 1
    %12 = vsyncpa %s11, 0
    %13 = vsyncpa [#allocation5], 0
    %s14 = scalar_lea.sflag [#allocation5], 1
    %15 = vsyncpa %s14, 0
    loop: start=0, step=1, limit=6
    $region2: #{tpu_custom_call.1} parent=1 // loop_pre_header
      _
    $region3: #{tpu_custom_call.1} parent=1 // loop_header
      %s17 = sphi 0, %s21
      %p18 = scmp.ge.s32.totalorder %s17, 6
      %s24 = sphi 0, %s43
      %s25 = sphi 0, %s39
      %s26 = sphi 0, %s35
      %s27 = sphi 0, %s24
      %s28 = sphi 0, %s25
      %s29 = sphi 0, %s26
      %s30 = sphi 0, %s27
      %s31 = sphi 0, %s28
      %s32 = sphi 0, %s29
      %s52 = sphi 0, %s54
      %s55 = sphi 0, %s52
      %s56 = sphi 0, %s55
      %s72 = sphi 0, %s56
      %s82 = sphi 0, %s84
      %s85 = sphi 0, %s82
      %s86 = sphi 0, %s85
      %s102 = sphi 0, %s86
      %s110 = sphi 0, %s112
      %s113 = sphi 0, %s110
      %s114 = sphi 0, %s113
      %s130 = sphi 0, %s114
    $region4: #{tpu_custom_call.1} parent=1 // loop_header_branch
      %20 = sbr.rel (%p18) target = $region8
    $region5: #{tpu_custom_call.1} parent=1 // loop_body
      %s22 = ssub.s32 %s17, 1
      %s23 = ssub.s32 %s17, 2
      %s33 = sadd.s32 1, %s26
      %p34 = scmp.ge.s32.totalorder %s33, 2
      %s35 = scalar_select %p34, 0, %s33
      %s36 = sadd.s32 1, %s25
      %s37 = scalar_select %p34, %s36, %s25
      %p38 = scmp.ge.s32.totalorder %s37, 1
      %s39 = scalar_select %p38, 0, %s37
      %s40 = sadd.s32 1, %s24
      %s41 = scalar_select %p38, %s40, %s24
      %p42 = scmp.ge.s32.totalorder %s41, 2
      %s43 = scalar_select %p42, 0, %s41
      %s44 = smul.u32 %s24, 2
      %s45 = sadd.s32 %s44, %s26
      %s46 = smul.u32 %s43, 2
      %s47 = sadd.s32 %s46, %s35
      %s48 = ssub.s32 %s25, %s39
      %s49 = ssub.s32 %s45, %s47
      %s50 = sor.u32 %s48, %s49
      %p51 = scmp.eq.s32.totalorder %s50, 0
      %s53 = sadd.s32 %s52, 1
      %s54 = scalar_select %p51, %s52, %s53
      %p57 = pneg %p51
      %p58 = scmp.eq.s32.totalorder %s17, 3
      %p59 = por %p57, %p58
      %p60 = scmp.ne.s32.totalorder %s52, %s55
      %p61 = scmp.eq.s32.totalorder %s17, 0
      %p62 = por %p60, %p61
      %p63 = scmp.ne.s32.totalorder %s52, %s55
      %p64 = scmp.eq.s32.totalorder %s22, 3
      %p65 = por %p63, %p64
      %p66 = scmp.ne.s32.totalorder %s55, %s56
      %p67 = scmp.eq.s32.totalorder %s22, 0
      %p68 = por %p66, %p67
      %p69 = scmp.ne.s32.totalorder %s55, %s56
      %p70 = scmp.eq.s32.totalorder %s23, 3
      %p71 = por %p69, %p70
      %p73 = scmp.ne.s32.totalorder %s56, %s72
      %p74 = scmp.eq.s32.totalorder %s23, 0
      %p75 = por %p73, %p74
      %s76 = smul.u32 %s24, 2
      %s77 = sadd.s32 %s76, %s26
      %s78 = smul.u32 %s43, 2
      %s79 = sadd.s32 %s78, %s35
      %s80 = ssub.s32 %s77, %s79
      %p81 = scmp.eq.s32.totalorder %s80, 0
      %s83 = sadd.s32 %s82, 1
      %s84 = scalar_select %p81, %s82, %s83
      %p87 = pneg %p81
      %p88 = scmp.eq.s32.totalorder %s17, 3
      %p89 = por %p87, %p88
      %p90 = scmp.ne.s32.totalorder %s82, %s85
      %p91 = scmp.eq.s32.totalorder %s17, 0
      %p92 = por %p90, %p91
      %p93 = scmp.ne.s32.totalorder %s82, %s85
      %p94 = scmp.eq.s32.totalorder %s22, 3
      %p95 = por %p93, %p94
      %p96 = scmp.ne.s32.totalorder %s85, %s86
      %p97 = scmp.eq.s32.totalorder %s22, 0
      %p98 = por %p96, %p97
      %p99 = scmp.ne.s32.totalorder %s85, %s86
      %p100 = scmp.eq.s32.totalorder %s23, 3
      %p101 = por %p99, %p100
      %p103 = scmp.ne.s32.totalorder %s86, %s102
      %p104 = scmp.eq.s32.totalorder %s23, 0
      %p105 = por %p103, %p104
      %s106 = ssub.s32 %s24, %s43
      %s107 = ssub.s32 %s25, %s39
      %s108 = sor.u32 %s106, %s107
      %p109 = scmp.eq.s32.totalorder %s108, 0
      %s111 = sadd.s32 %s110, 1
      %s112 = scalar_select %p109, %s110, %s111
      %p115 = pneg %p109
      %p116 = scmp.eq.s32.totalorder %s17, 3
      %p117 = por %p115, %p116
      %p118 = scmp.ne.s32.totalorder %s110, %s113
      %p119 = scmp.eq.s32.totalorder %s17, 0
      %p120 = por %p118, %p119
      %p121 = scmp.ne.s32.totalorder %s110, %s113
      %p122 = scmp.eq.s32.totalorder %s22, 3
      %p123 = por %p121, %p122
      %p124 = scmp.ne.s32.totalorder %s113, %s114
      %p125 = scmp.eq.s32.totalorder %s22, 0
      %p126 = por %p124, %p125
      %p127 = scmp.ne.s32.totalorder %s113, %s114
      %p128 = scmp.eq.s32.totalorder %s23, 3
      %p129 = por %p127, %p128
      %p131 = scmp.ne.s32.totalorder %s114, %s130
      %p132 = scmp.eq.s32.totalorder %s23, 0
      %p133 = por %p131, %p132
      %p134 = scmp.le.s32.totalorder 1, %s17
      %p135 = scmp.lt.s32.totalorder %s17, 5
      %p136 = pnand %p134, %p135
      %p137 = pneg %p136
      // Predicated region
      $region9: #{tpu_custom_call.1} parent=5 // pred_check
        _
      $region10: #{tpu_custom_call.1} parent=5 // pred_check_branch
        %139 = sbr.rel (%p136) target = $region12
      $region11: #{tpu_custom_call.1} parent=5 // pred_region
        %s140 = ssub.s32 %s17, 1
      $region12: #{tpu_custom_call.1} parent=5 // pred_fallthru
        _
      %p141 = scmp.lt.s32.totalorder %s17, 4
      // Predicated region
      $region13: #{tpu_custom_call.1} parent=5 // pred_check
        %p142 = pneg %p141
      $region14: #{tpu_custom_call.1} parent=5 // pred_check_branch
        %144 = sbr.rel (%p142) target = $region16
      $region15: #{tpu_custom_call.1} parent=5 // pred_region
        // Predicated region
        $region17: #{tpu_custom_call.1} parent=15 // pred_check
          %p145 = pneg %p62
        $region18: #{tpu_custom_call.1} parent=15 // pred_check_branch
          %147 = sbr.rel (%p145) target = $region20
        $region19: #{tpu_custom_call.1} parent=15 // pred_region
          %s148 = sand.u32 %s52, 1
          %s149 = scalar_lea.sflag [#allocation4], %s148
          %s150 = sand.u32 %s52, 1
          %s151 = smul.addr %s150, 16
          %s152 = scalar_lea.vmem [#allocation3], %s151
          %s153 = smul.u32 %s24, 2
          %s154 = sadd.s32 %s153, %s26
          %s155 = smul.u32 2, %s154
          %157 = vsyncadd %s149, 0
          %s158 = smul.addr %s25, 8
          %s159 = sadd.s32 %s155, %s158
          %s160 = smul.addr %s159, 8
          %s161 = scalar_lea.hbm %s0, %s160
          %s163 = sshll.u32 %s161, 4
          %s164 = int_to_ptr.hbm [resolvable:$true] %s163
          %s165 = sshll.u32 %s152, 4
          %s166 = int_to_ptr.vmem [resolvable:$true] %s165
          %168 = dma.hbm_to_vmem [thread:$0]  %s164, 256, %s166, %s149
        $region20: #{tpu_custom_call.1} parent=15 // pred_fallthru
          _
        // Predicated region
        $region21: #{tpu_custom_call.1} parent=15 // pred_check
          %p169 = pneg %p92
        $region22: #{tpu_custom_call.1} parent=15 // pred_check_branch
          %171 = sbr.rel (%p169) target = $region24
        $region23: #{tpu_custom_call.1} parent=15 // pred_region
          %s172 = sand.u32 %s82, 1
          %s173 = scalar_lea.sflag [#allocation7], %s172
          %s174 = sand.u32 %s82, 1
          %s175 = smul.addr %s174, 128
          %s176 = scalar_lea.vmem [#allocation6], %s175
          %s177 = smul.u32 %s24, 2
          %s178 = sadd.s32 %s177, %s26
          %s179 = smul.u32 32, %s178
          %181 = vsyncadd %s173, 0
          %s182 = smul.addr %s179, 4
          %s183 = scalar_lea.hbm %s1, %s182
          %s184 = sshll.u32 %s183, 4
          %s185 = int_to_ptr.hbm [resolvable:$true] %s184
          %s186 = sshll.u32 %s176, 4
          %s187 = int_to_ptr.vmem [resolvable:$true] %s186
          %192 = dma.hbm_to_vmem [thread:$0]  %s185, 2048, %s187, %s173, 64, 64, 4
        $region24: #{tpu_custom_call.1} parent=15 // pred_fallthru
          _
      $region16: #{tpu_custom_call.1} parent=5 // pred_fallthru
        _
      %p193 = scmp.le.s32.totalorder 1, %s17
      %p194 = scmp.lt.s32.totalorder %s17, 5
      %p195 = pnand %p193, %p194
      %p196 = pneg %p195
      // Predicated region
      $region25: #{tpu_custom_call.1} parent=5 // pred_check
        _
      $region26: #{tpu_custom_call.1} parent=5 // pred_check_branch
        %198 = sbr.rel (%p195) target = $region28
      $region27: #{tpu_custom_call.1} parent=5 // pred_region
        %s199 = ssub.s32 %s17, 1
        %s200 = sand.u32 %s55, 1
        %s201 = scalar_lea.sflag [#allocation4], %s200
        %s202 = sand.u32 %s55, 1
        %s203 = smul.addr %s202, 16
        %s204 = scalar_lea.vmem [#allocation3], %s203
        // Predicated region
        $region29: #{tpu_custom_call.1} parent=27 // pred_check
          %p205 = pneg %p68
        $region30: #{tpu_custom_call.1} parent=27 // pred_check_branch
          %207 = sbr.rel (%p205) target = $region32
        $region31: #{tpu_custom_call.1} parent=27 // pred_region
          %209 = dma.done %s201, 256
        $region32: #{tpu_custom_call.1} parent=27 // pred_fallthru
          _
        %s210 = sand.u32 %s85, 1
        %s211 = scalar_lea.sflag [#allocation7], %s210
        %s212 = sand.u32 %s85, 1
        %s213 = smul.addr %s212, 128
        %s214 = scalar_lea.vmem [#allocation6], %s213
        // Predicated region
        $region33: #{tpu_custom_call.1} parent=27 // pred_check
          %p215 = pneg %p98
        $region34: #{tpu_custom_call.1} parent=27 // pred_check_branch
          %217 = sbr.rel (%p215) target = $region36
        $region35: #{tpu_custom_call.1} parent=27 // pred_region
          %219 = dma.done %s211, 2048
        $region36: #{tpu_custom_call.1} parent=27 // pred_fallthru
          _
        %s220 = sand.u32 %s55, 1
        %s221 = scalar_lea.sflag [#allocation4], %s220
        %s222 = sand.u32 %s55, 1
        %s223 = smul.addr %s222, 16
        %s224 = scalar_lea.vmem [#allocation3], %s223
        %p225 = pneg %p68
        %p226 = pneg %p65
        %s227 = sand.u32 %s85, 1
        %s228 = scalar_lea.sflag [#allocation7], %s227
        %s229 = sand.u32 %s85, 1
        %s230 = smul.addr %s229, 128
        %s231 = scalar_lea.vmem [#allocation6], %s230
        %p232 = pneg %p98
        %p233 = pneg %p95
        %p234 = pneg %p126
        %p235 = pneg %p123
        %s236 = sand.u32 %s113, 1
        %s237 = scalar_lea.sflag [#allocation5], %s236
        %s238 = sand.u32 %s113, 1
        %s239 = smul.addr %s238, 8
        %s240 = scalar_lea.vmem [#allocation8], %s239
        %s241 = smul.u32 %s27, 2
        %s242 = sadd.s32 %s241, %s29
        %s243 = smul.u32 2, %s242
        %s244 = smul.u32 %s27, 2
        %s245 = sadd.s32 %s244, %s29
        %s246 = smul.u32 32, %s245
        %p247 = scmp.eq.s32.totalorder %s29, 0
        // Predicated region
        $region37: #{tpu_custom_call.1} parent=27 // pred_check
          %p248 = pneg %p247
        $region38: #{tpu_custom_call.1} parent=27 // pred_check_branch
          %250 = sbr.rel (%p248) target = $region40
        $region39: #{tpu_custom_call.1} parent=27 // pred_region
          %251 = vst [vmem:[#allocation2] sm:$0xff] 0.0
        $region40: #{tpu_custom_call.1} parent=27 // pred_fallthru
          _
        %v252 = vld [vmem:[%s204] sm:$0xff]
        %v253 = vld [vmem:[%s204 + $0x8] sm:$0xff]
        %v254 = vld [vmem:[#allocation2] sm:$0xff]
        %v255 = vpack.c.bf16 %v252, %v252
        %v256 = vpack.c.bf16 %v253, %v253
        %v257 = vld [vmem:[%s214] sm:$0xf]
        %v258 = vld [vmem:[%s214 + $0x4] sm:$0xf]
        %v259 = vld [vmem:[%s214 + $0x8] sm:$0xf]
        %v260 = vld [vmem:[%s214 + $0xc] sm:$0xf]
        %v261 = vld [vmem:[%s214 + $0x10] sm:$0xf]
        %v262 = vld [vmem:[%s214 + $0x14] sm:$0xf]
        %v263 = vld [vmem:[%s214 + $0x18] sm:$0xf]
        %v264 = vld [vmem:[%s214 + $0x1c] sm:$0xf]
        %v265 = vld [vmem:[%s214 + $0x20] sm:$0xf]
        %v266 = vld [vmem:[%s214 + $0x24] sm:$0xf]
        %v267 = vld [vmem:[%s214 + $0x28] sm:$0xf]
        %v268 = vld [vmem:[%s214 + $0x2c] sm:$0xf]
        %v269 = vld [vmem:[%s214 + $0x30] sm:$0xf]
        %v270 = vld [vmem:[%s214 + $0x34] sm:$0xf]
        %v271 = vld [vmem:[%s214 + $0x38] sm:$0xf]
        %v272 = vld [vmem:[%s214 + $0x3c] sm:$0xf]
        %v273 = vld [vmem:[%s214 + $0x40] sm:$0xf]
        %v274 = vld [vmem:[%s214 + $0x44] sm:$0xf]
        %v275 = vld [vmem:[%s214 + $0x48] sm:$0xf]
        %v276 = vld [vmem:[%s214 + $0x4c] sm:$0xf]
        %v277 = vld [vmem:[%s214 + $0x50] sm:$0xf]
        %v278 = vld [vmem:[%s214 + $0x54] sm:$0xf]
        %v279 = vld [vmem:[%s214 + $0x58] sm:$0xf]
        %v280 = vld [vmem:[%s214 + $0x5c] sm:$0xf]
        %v281 = vld [vmem:[%s214 + $0x60] sm:$0xf]
        %v282 = vld [vmem:[%s214 + $0x64] sm:$0xf]
        %v283 = vld [vmem:[%s214 + $0x68] sm:$0xf]
        %v284 = vld [vmem:[%s214 + $0x6c] sm:$0xf]
        %v285 = vld [vmem:[%s214 + $0x70] sm:$0xf]
        %v286 = vld [vmem:[%s214 + $0x74] sm:$0xf]
        %v287 = vld [vmem:[%s214 + $0x78] sm:$0xf]
        %v288 = vld [vmem:[%s214 + $0x7c] sm:$0xf]
        %v321 = vunpack.c.l.b16 %v257
        %v322 = vunpack.c.l.b16 %v258
        %v323 = vunpack.c.l.b16 %v259
        %v324 = vunpack.c.l.b16 %v260
        %v325 = vunpack.c.l.b16 %v261
        %v326 = vunpack.c.l.b16 %v262
        %v327 = vunpack.c.l.b16 %v263
        %v328 = vunpack.c.l.b16 %v264
        %v329 = vunpack.c.l.b16 %v265
        %v330 = vunpack.c.l.b16 %v266
        %v331 = vunpack.c.l.b16 %v267
        %v332 = vunpack.c.l.b16 %v268
        %v333 = vunpack.c.l.b16 %v269
        %v334 = vunpack.c.l.b16 %v270
        %v335 = vunpack.c.l.b16 %v271
        %v336 = vunpack.c.l.b16 %v272
        %v337 = vunpack.c.l.b16 %v273
        %v338 = vunpack.c.l.b16 %v274
        %v339 = vunpack.c.l.b16 %v275
        %v340 = vunpack.c.l.b16 %v276
        %v341 = vunpack.c.l.b16 %v277
        %v342 = vunpack.c.l.b16 %v278
        %v343 = vunpack.c.l.b16 %v279
        %v344 = vunpack.c.l.b16 %v280
        %v345 = vunpack.c.l.b16 %v281
        %v346 = vunpack.c.l.b16 %v282
        %v347 = vunpack.c.l.b16 %v283
        %v348 = vunpack.c.l.b16 %v284
        %v349 = vunpack.c.l.b16 %v285
        %v350 = vunpack.c.l.b16 %v286
        %v351 = vunpack.c.l.b16 %v287
        %v352 = vunpack.c.l.b16 %v288
        %v353 = vpack.c.b16 %v322, %v321
        %v354 = vpack.c.b16 %v324, %v323
        %v355 = vpack.c.b16 %v326, %v325
        %v356 = vpack.c.b16 %v328, %v327
        %v357 = vpack.c.b16 %v330, %v329
        %v358 = vpack.c.b16 %v332, %v331
        %v359 = vpack.c.b16 %v334, %v333
        %v360 = vpack.c.b16 %v336, %v335
        %v361 = vpack.c.b16 %v338, %v337
        %v362 = vpack.c.b16 %v340, %v339
        %v363 = vpack.c.b16 %v342, %v341
        %v364 = vpack.c.b16 %v344, %v343
        %v365 = vpack.c.b16 %v346, %v345
        %v366 = vpack.c.b16 %v348, %v347
        %v367 = vpack.c.b16 %v350, %v349
        %v368 = vpack.c.b16 %v352, %v351
        %385 = vmatpush.bf16.msra.mxu0 %v360
        %386 = vmatpush.bf16.msra.mxu0 %v359
        %387 = vmatpush.bf16.msra.mxu0 %v358
        %388 = vmatpush.bf16.msra.mxu0 %v357
        %389 = vmatpush.bf16.msra.mxu0 %v356
        %390 = vmatpush.bf16.msra.mxu0 %v355
        %391 = vmatpush.bf16.msra.mxu0 %v354
        %392 = vmatpush.bf16.msra.mxu0 %v353
        %393 = vmatmul.bf16.gmra.mxu0 %v255
        %v394 = vpop.f32.mrf.mxu0
        %v395 = vadd.f32 0.0, %v394
        %v396 = vpop.f32.mrf.mxu0
        %397 = vdwg.mxu0
        %398 = vmatpush.bf16.msra.mxu0 %v368
        %399 = vmatpush.bf16.msra.mxu0 %v367
        %400 = vmatpush.bf16.msra.mxu0 %v366
        %401 = vmatpush.bf16.msra.mxu0 %v365
        %402 = vmatpush.bf16.msra.mxu0 %v364
        %403 = vmatpush.bf16.msra.mxu0 %v363
        %404 = vmatpush.bf16.msra.mxu0 %v362
        %405 = vmatpush.bf16.msra.mxu0 %v361
        %406 = vmatmul.bf16.gmra.mxu0 %v256
        %v407 = vpop.f32.mrf.mxu0
        %v408 = vadd.f32 %v395, %v407
        %v409 = vpop.f32.mrf.mxu0
        %410 = vdwg.mxu0
        %v411 = vadd.f32 %v254, %v408
        %412 = vst [vmem:[#allocation2] sm:$0xff] %v411
        %v413 = vmul.f32 %v252, 255.0
        %v414 = vmul.f32 %v253, 255.0
        %v415 = vfloor.f32 %v413
        %v416 = vfloor.f32 %v414
        %v417 = vmul.f32 %v415, 0.5
        %v418 = vmul.f32 %v416, 0.5
        %v419 = vfloor.f32 %v417
        %v420 = vfloor.f32 %v418
        %v421 = vmul.f32 %v419, 2.0
        %v422 = vmul.f32 %v420, 2.0
        %v423 = vsub.f32 %v415, %v421
        %v424 = vsub.f32 %v416, %v422
        %v425 = vld [vmem:[#allocation2] sm:$0xff]
        %v426 = vadd.f32 %v423, %v424
        %427 = vadd.xlane.f32.xlu0 %v426
        %v428 = vpop.xlane.xlu0 %427
        %v429 = vadd.f32 %v425, %v428
        %vm430 = vcmask 146568
        %431 = vst.msk [vmem:[#allocation2] sm:$0xff] %vm430, %v429
        %p432 = scmp.eq.s32.totalorder %s29, 1
        // Predicated region
        $region41: #{tpu_custom_call.1} parent=27 // pred_check
          %p433 = pneg %p432
        $region42: #{tpu_custom_call.1} parent=27 // pred_check_branch
          %435 = sbr.rel (%p433) target = $region44
        $region43: #{tpu_custom_call.1} parent=27 // pred_region
          %v436 = vld [vmem:[#allocation2] sm:$0xff]
          %437 = vst [vmem:[%s240] sm:$0xff] %v436
        $region44: #{tpu_custom_call.1} parent=27 // pred_fallthru
          _
        %s438 = sand.u32 %s113, 1
        %s439 = scalar_lea.sflag [#allocation5], %s438
        %s440 = sand.u32 %s113, 1
        %s441 = smul.addr %s440, 8
        %s442 = scalar_lea.vmem [#allocation8], %s441
        // Predicated region
        $region45: #{tpu_custom_call.1} parent=27 // pred_check
          %p443 = pneg %p123
        $region46: #{tpu_custom_call.1} parent=27 // pred_check_branch
          %445 = sbr.rel (%p443) target = $region48
        $region47: #{tpu_custom_call.1} parent=27 // pred_region
          %447 = vsyncadd %s439, 0
          %s448 = sadd.s32 %s28, %s27
          %s449 = smul.addr %s448, 8
          %s450 = scalar_lea.hbm %s2, %s449
          %s452 = sshll.u32 %s442, 4
          %s453 = int_to_ptr.vmem [resolvable:$true] %s452
          %s454 = sshll.u32 %s450, 4
          %s455 = int_to_ptr.hbm [resolvable:$true] %s454
          %457 = dma.vmem_to_hbm [thread:$0]  %s453, 128, %s455, %s439
        $region48: #{tpu_custom_call.1} parent=27 // pred_fallthru
          _
      $region28: #{tpu_custom_call.1} parent=5 // pred_fallthru
        _
      %p458 = scmp.le.s32.totalorder 2, %s17
      // Predicated region
      $region49: #{tpu_custom_call.1} parent=5 // pred_check
        %p459 = pneg %p458
      $region50: #{tpu_custom_call.1} parent=5 // pred_check_branch
        %461 = sbr.rel (%p459) target = $region52
      $region51: #{tpu_custom_call.1} parent=5 // pred_region
        %s462 = ssub.s32 %s17, 2
        // Predicated region
        $region53: #{tpu_custom_call.1} parent=51 // pred_check
          %p463 = pneg %p129
        $region54: #{tpu_custom_call.1} parent=51 // pred_check_branch
          %465 = sbr.rel (%p463) target = $region56
        $region55: #{tpu_custom_call.1} parent=51 // pred_region
          %s466 = sand.u32 %s114, 1
          %s467 = scalar_lea.sflag [#allocation5], %s466
          %s468 = sand.u32 %s114, 1
          %s469 = smul.addr %s468, 8
          %s470 = scalar_lea.vmem [#allocation8], %s469
          %472 = dma.done %s467, 128
        $region56: #{tpu_custom_call.1} parent=51 // pred_fallthru
          _
      $region52: #{tpu_custom_call.1} parent=5 // pred_fallthru
        _
    $region6: #{tpu_custom_call.1} parent=1 // loop_footer
      %s21 = sadd.s32 1, %s17
    $region7: #{tpu_custom_call.1} parent=1 // loop_footer_branch
      %16 = sbr.rel target = $region3
    $region8: #{tpu_custom_call.1} parent=1 // loop_exit
      _
    %473 = vsyncpa [#allocation4], 1
    %s474 = scalar_lea.sflag [#allocation4], 1
    %475 = vsyncpa %s474, 1
    %476 = vsyncpa [#allocation7], 1
    %s477 = scalar_lea.sflag [#allocation7], 1
    %478 = vsyncpa %s477, 1
    %479 = vsyncpa [#allocation5], 1
    %s480 = scalar_lea.sflag [#allocation5], 1
    %481 = vsyncpa %s480, 1

</llo_original>
